<compile_context>
chip_gen: v7x
topology: tpu7x:2x2x1
jax: 0.10.0
libtpu: 0.0.40
codegen_flags: <defaults>
</compile_context>

<pallas_src>
import jax
import jax.numpy as jnp
import numpy as np
from jax import lax
from jax.experimental import pallas as pl
from jax.experimental.pallas import tpu as pltpu


def _round_up(x, m):
    return ((x + m - 1) // m) * m


def _cdiv(a, b):
    return (a + b - 1) // b


def _sentence_kernel(x_ref, w_ref, b1_ref, w2_ref, out_ref):
    # x_ref:   (tn, K)   lane-dense flattened (time*feature) rows, one row per sentence
    # w_ref:   (K, H)    first-layer weight with the time-mean folded in (tile(w1,T)/T)
    # b1_ref:  (1, H)    f32
    # w2_ref:  (1, H)    f32, second-layer weight as a row
    # out_ref: (2, tn)   f32; row 0 = masked score, row 1 = valid flag (lane-dense stores)
    x = x_ref[...]                                                       # (tn, K)

    # mean-pool + first layer fused into one MXU matmul (f32 accumulation)
    h = jnp.tanh(
        jnp.dot(x, w_ref[...], preferred_element_type=jnp.float32) + b1_ref[...]
    )                                                                    # (tn, H) f32

    # second layer directly in lane-dense (1, tn) form: w2 (1,H) contracted with h (tn,H)
    s_row = lax.dot_general(
        w2_ref[...], h, (((1,), (1,)), ((), ())),
        preferred_element_type=jnp.float32)                              # (1, tn)

    # sentence validity (count_nonzero > 0), also lane-dense via a 1-row matmul.
    # (bf16 inputs: a nonzero value could only flip to 0 if below bf16's subnormal
    #  range (~1e-38 * 2^-7) -- negligible for eye-tracking features.)
    nz = (x != 0).astype(x.dtype)                                        # (tn, K) 0/1
    ones_row = jnp.ones((1, x.shape[1]), dtype=x.dtype)                  # (1, K)
    cnt_row = lax.dot_general(
        ones_row, nz, (((1,), (1,)), ((), ())),
        preferred_element_type=jnp.float32)                              # (1, tn)
    valid_row = (cnt_row > 0.0).astype(jnp.float32)                      # (1, tn)

    out_ref[...] = jnp.concatenate([s_row * valid_row, valid_row], axis=0)  # (2, tn)


def eyetracking_predict(x_bstf, w1, b1, w2, b2, *, tn=None, compute_dtype=jnp.bfloat16):
    """x_bstf: (B, S, T, F) (F already includes the reading-speed column).
    Returns per-subject predictions of shape (B,).

    compute_dtype: dtype fed to the kernel for x / layer-1 weights.  bf16 halves HBM
    input traffic (the kernel is HBM-read bound); for maximum benefit the caller
    should hand in x already in bf16 so the cast fuses with whatever produced it.
    """
    B, S, T, F = x_bstf.shape
    N = B * S
    K = T * F
    H = w1.shape[1]

    itemsize = jnp.dtype(compute_dtype).itemsize
    if tn is None:
        # Large tiles amortize the ~0.35us/step overhead: target ~2 MiB of x per block
        # (<= ~4 MiB double-buffered: well under every generation's scoped-VMEM default;
        #  raise vmem_limit_bytes in CompilerParams if you push tn much higher on v5e).
        tn = max(128, min(4096, (2 * 1024 * 1024) // max(K * itemsize, 1)))
        # Keep >= 2 grid steps when N allows so v7x megacore shards across both TCs.
        tn = min(tn, max(128, _round_up(_cdiv(N, 2), 128)))
    # tn must be a multiple of 128 so the (2, tn) output block is lane-dense/unmasked
    # (and >= bf16's 16-row sublane packing for the input block).
    tn = max(128, _round_up(int(tn), 128))

    num_blocks = _cdiv(N, tn)
    n_pad = num_blocks * tn          # only the tiny (2, n_pad) OUTPUT is over-allocated

    # Lane-dense layout: (N, T*F) is a free row-major reshape; x itself is never padded.
    # The ragged tail block reads undefined rows past N; per-row compute never mixes
    # rows and the epilogue slices [:N], so that is safe.
    x2d = x_bstf.reshape(N, K).astype(compute_dtype)

    # fold the time-mean into layer 1: x2d @ w_eff == mean_t(x) @ w1
    w_eff = (jnp.tile(w1.astype(jnp.float32), (T, 1)) / jnp.float32(T)).astype(compute_dtype)
    b1_2d = b1.reshape(1, H).astype(jnp.float32)
    w2_row = w2.reshape(1, H).astype(jnp.float32)

    out = pl.pallas_call(
        _sentence_kernel,
        out_shape=jax.ShapeDtypeStruct((2, n_pad), jnp.float32),
        grid=(num_blocks,),
        in_specs=[
            pl.BlockSpec((tn, K), lambda i: (i, 0)),   # streamed input (last dim = full K)
            pl.BlockSpec((K, H), lambda i: (0, 0)),    # resident weight
            pl.BlockSpec((1, H), lambda i: (0, 0)),
            pl.BlockSpec((1, H), lambda i: (0, 0)),
        ],
        out_specs=pl.BlockSpec((2, tn), lambda i: (0, i)),
        compiler_params=pltpu.CompilerParams(
            dimension_semantics=("parallel",),
        ),
    )(x2d, w_eff, b1_2d, w2_row)

    # Tiny per-subject epilogue in XLA. b2 is a constant per-sentence offset, so
    # masked_mean(score + b2) == masked_mean(score) + b2.
    # (A subject with zero valid sentences gives 0/0 -> NaN, matching the reference's
    #  failure mode on an empty stack.)
    score_bs = out[0, :N].reshape(B, S)
    valid_bs = out[1, :N].reshape(B, S)
    return score_bs.sum(axis=1) / valid_bs.sum(axis=1) + b2[0]


def _reference_predict(x_bstf, w1, b1, w2, b2):
    B, S, T, F = x_bstf.shape
    x_flat = x_bstf.reshape(B * S, T, F)
    pooled = x_flat.mean(axis=1)
    h = jnp.tanh(pooled @ w1 + b1)
    score = (h @ w2 + b2.reshape(1, 1))[:, 0].reshape(B, S)
    valid = (jnp.count_nonzero(x_flat.reshape(B, S, -1), axis=2) > 0).astype(jnp.float32)
    return (score * valid).sum(axis=1) / valid.sum(axis=1)


if __name__ == "__main__":
    # small shapes consistent with the module:
    #   B subjects, S sentences each, T fixations, num_features eye-tracking features,
    #   +1 reading-speed column appended on the last axis (as in train_model's F.pad).
    # N = B*S = 256 -> default tn = 128 -> grid = (2,), so the pipeline (and v7x
    # dual-core sharding) is actually exercised.
    B, S, T, num_features, H = 2, 128, 16, 7, 32
    F = num_features + 1  # input_size = data.num_features + 1  (T*F = 128: lane-dense)

    key = jax.random.PRNGKey(0)
    k_x, k_w1, k_b1, k_w2, k_b2, k_rs = jax.random.split(key, 6)

    # raw eye-tracking input + per-subject reading-speed column
    x_raw = jax.random.normal(k_x, (B, S, T, num_features), dtype=jnp.float32)
    speed = jax.random.uniform(k_rs, (B,), dtype=jnp.float32, minval=100.0, maxval=400.0)
    speed_col = jnp.broadcast_to(speed[:, None, None, None], (B, S, T, 1))
    x = jnp.concatenate([x_raw, speed_col], axis=-1)                      # (B, S, T, F)

    # fully zero a few sentence slots to exercise the count_nonzero()>0 exclusion path
    dead = (jnp.arange(S)[None, :] % 16) == (3 + 4 * jnp.arange(B)[:, None])  # (B, S)
    x = x * (~dead)[:, :, None, None].astype(jnp.float32)

    # deterministic synthetic parameters
    w1 = 0.1 * jax.random.normal(k_w1, (F, H), dtype=jnp.float32)
    b1 = 0.1 * jax.random.normal(k_b1, (H,), dtype=jnp.float32)
    w2 = 0.1 * jax.random.normal(k_w2, (H, 1), dtype=jnp.float32)
    b2 = 0.1 * jax.random.normal(k_b2, (1,), dtype=jnp.float32)

    y_ref = _reference_predict(x, w1, b1, w2, b2)

    # f32 path: validates the kernel structure tightly against the f32 reference
    # (the mean fold into the matmul only reorders f32 summation).
    y_f32 = jax.block_until_ready(
        eyetracking_predict(x, w1, b1, w2, b2, compute_dtype=jnp.float32))
    np.testing.assert_allclose(np.asarray(y_f32), np.asarray(y_ref), rtol=1e-3, atol=1e-3)

    # bf16 path (default, halves HBM input traffic): looser tolerance vs f32 reference.
    y_bf16 = jax.block_until_ready(eyetracking_predict(x, w1, b1, w2, b2))
    np.testing.assert_allclose(np.asarray(y_bf16), np.asarray(y_ref), rtol=3e-2, atol=3e-2)

    print("KERNEL_OK")
</pallas_src>

<mosaic_0001>
module attributes {stable_mosaic.version = 11 : i64} {
  func.func @_sentence_kernel(%arg0: i32, %arg1: memref<128x128xf32, #tpu.memory_space<vmem>>, %arg2: memref<128x32xf32, #tpu.memory_space<vmem>>, %arg3: memref<1x32xf32, #tpu.memory_space<vmem>>, %arg4: memref<1x32xf32, #tpu.memory_space<vmem>>, %arg5: memref<2x128xf32, #tpu.memory_space<vmem>>) attributes {dimension_semantics = [#tpu.dimension_semantics<parallel>], iteration_bounds = array<i64: 2>, scalar_prefetch = 0 : i64, scratch_operands = 0 : i64, tpu.core_type = #tpu.core_type<tc>, window_params = [{transform_indices = @transform_0, window_bounds = array<i64: 128, 128>}, {pipeline_mode = #tpu.pipeline_mode<synchronous>, transform_indices = @transform_1, window_bounds = array<i64: 128, 32>}, {pipeline_mode = #tpu.pipeline_mode<synchronous>, transform_indices = @transform_2, window_bounds = array<i64: 1, 32>}, {pipeline_mode = #tpu.pipeline_mode<synchronous>, transform_indices = @transform_3, window_bounds = array<i64: 1, 32>}, {transform_indices = @transform_4, window_bounds = array<i64: 2, 128>}]} {
    %c0 = arith.constant 0 : index
    %c0_0 = arith.constant 0 : index
    %0 = vector.load %arg1[%c0, %c0_0] : memref<128x128xf32, #tpu.memory_space<vmem>>, vector<128x128xf32>
    %c0_1 = arith.constant 0 : index
    %c0_2 = arith.constant 0 : index
    %1 = vector.load %arg2[%c0_1, %c0_2] : memref<128x32xf32, #tpu.memory_space<vmem>>, vector<128x32xf32>
    %cst = arith.constant dense<0.000000e+00> : vector<128x32xf32>
    %2 = tpu.matmul %0, %1, %cst {dimension_numbers = #tpu.dot_dimension_numbers<[1], [0], [0], [1], [0, 0, 1, 1], [], []>} : vector<128x128xf32>, vector<128x32xf32>, vector<128x32xf32> -> vector<128x32xf32>
    %c0_3 = arith.constant 0 : index
    %c0_4 = arith.constant 0 : index
    %3 = vector.load %arg3[%c0_3, %c0_4] : memref<1x32xf32, #tpu.memory_space<vmem>>, vector<1x32xf32>
    %4 = vector.broadcast %3 : vector<1x32xf32> to vector<128x32xf32>
    %5 = arith.addf %2, %4 : vector<128x32xf32>
    %6 = math.tanh %5 : vector<128x32xf32>
    %c0_5 = arith.constant 0 : index
    %c0_6 = arith.constant 0 : index
    %7 = vector.load %arg4[%c0_5, %c0_6] : memref<1x32xf32, #tpu.memory_space<vmem>>, vector<1x32xf32>
    %cst_7 = arith.constant dense<0.000000e+00> : vector<1x128xf32>
    %8 = tpu.matmul %7, %6, %cst_7 {dimension_numbers = #tpu.dot_dimension_numbers<[1], [1], [0], [0], [0, 0, 1, 0], [], []>} : vector<1x32xf32>, vector<128x32xf32>, vector<1x128xf32> -> vector<1x128xf32>
    %cst_8 = arith.constant 0.000000e+00 : f32
    %9 = vector.broadcast %cst_8 : f32 to vector<128x128xf32>
    %10 = arith.cmpf one, %0, %9 : vector<128x128xf32>
    %11 = arith.extui %10 : vector<128x128xi1> to vector<128x128xi32>
    %12 = arith.sitofp %11 : vector<128x128xi32> to vector<128x128xf32>
    %cst_9 = arith.constant 1.000000e+00 : f32
    %13 = vector.broadcast %cst_9 : f32 to vector<1x128xf32>
    %cst_10 = arith.constant dense<0.000000e+00> : vector<1x128xf32>
    %14 = tpu.matmul %13, %12, %cst_10 {dimension_numbers = #tpu.dot_dimension_numbers<[1], [1], [0], [0], [0, 0, 1, 0], [], []>} : vector<1x128xf32>, vector<128x128xf32>, vector<1x128xf32> -> vector<1x128xf32>
    %cst_11 = arith.constant 0.000000e+00 : f32
    %15 = vector.broadcast %cst_11 : f32 to vector<1x128xf32>
    %16 = arith.cmpf ogt, %14, %15 : vector<1x128xf32>
    %17 = arith.extui %16 : vector<1x128xi1> to vector<1x128xi32>
    %18 = arith.sitofp %17 : vector<1x128xi32> to vector<1x128xf32>
    %19 = arith.mulf %8, %18 : vector<1x128xf32>
    %20 = tpu.concatenate %19, %18 in 0 : vector<1x128xf32>, vector<1x128xf32> -> vector<2x128xf32>
    %c0_12 = arith.constant 0 : index
    %c0_13 = arith.constant 0 : index
    %21 = vector.load %arg5[%c0_12, %c0_13] : memref<2x128xf32, #tpu.memory_space<vmem>>, vector<2x128xf32>
    tpu.vector_store %arg5[%c0_12, %c0_13], %20 {strides = array<i32>} : memref<2x128xf32, #tpu.memory_space<vmem>>, vector<2x128xf32>,
    return
  }
  func.func @transform_0(%arg0: i32) -> (i32, i32) {
    %c0_i32 = arith.constant 0 : i32
    %c0_i32_0 = arith.constant 0 : i32
    return %arg0, %c0_i32 : i32, i32
  }
  func.func @transform_1(%arg0: i32) -> (i32, i32) {
    %c0_i32 = arith.constant 0 : i32
    %c0_i32_0 = arith.constant 0 : i32
    %c0_i32_1 = arith.constant 0 : i32
    return %c0_i32, %c0_i32_0 : i32, i32
  }
  func.func @transform_2(%arg0: i32) -> (i32, i32) {
    %c0_i32 = arith.constant 0 : i32
    %c0_i32_0 = arith.constant 0 : i32
    %c0_i32_1 = arith.constant 0 : i32
    return %c0_i32, %c0_i32_0 : i32, i32
  }
  func.func @transform_3(%arg0: i32) -> (i32, i32) {
    %c0_i32 = arith.constant 0 : i32
    %c0_i32_0 = arith.constant 0 : i32
    %c0_i32_1 = arith.constant 0 : i32
    return %c0_i32, %c0_i32_0 : i32, i32
  }
  func.func @transform_4(%arg0: i32) -> (i32, i32) {
    %c0_i32 = arith.constant 0 : i32
    %c0_i32_0 = arith.constant 0 : i32
    return %c0_i32, %arg0 : i32, i32
  }
}

</mosaic_0001>

<llo_original>
// kernel: tpu_custom_call.1
$region0: #{tpu_custom_call.1}
  #allocation0 [shape = 'u32[]', space=smem, size = 0x4, offset = 0x4, fixed_abs, tag = 'smem constant byte address 0x4 - core index']
  #allocation1 [shape = 'u32[144,128]{1,0:T(1,128)}', space=vmem, size = 0x12000, scoped, tag = 'internal scratch']
  %s0 = inlined_call_operand.hbm [shape: f32[256,128], index: 0, kind: input, shape index: {}]
  %s1 = inlined_call_operand.vmem [shape: f32[128,32], index: 1, kind: input, shape index: {}]
  %s2 = inlined_call_operand.vmem [shape: f32[1,32], index: 2, kind: input, shape index: {}]
  %s3 = inlined_call_operand.vmem [shape: f32[1,32], index: 3, kind: input, shape index: {}]
  %s4 = inlined_call_operand.hbm [shape: f32[2,256], index: 4, kind: output, shape index: {}]
  %s5 = sld [smem:[#allocation0]]
  $region53: #{tpu_custom_call.1} parent=0
    _
  %s7 = ssub.s32 1, %s5
  %s8 = scalar_select 0, %s7, %s5
  $region1: #{tpu_custom_call.1} parent=0
    #allocation2 [shape = 'u8[131072]{0}', space=vmem, size = 0x20000, scoped, tag = 'input window, operand 0']
    #allocation3 [shape = 's32[2]{0}', space=sflag, size = 0x8, scoped, tag = 'scoped memory for tpu_custom_call.1']
    #allocation4 [shape = 's32[2]{0}', space=sflag, size = 0x8, scoped, tag = 'scoped memory for tpu_custom_call.1']
    #allocation5 [shape = 'u8[2048]{0}', space=vmem, size = 0x800, scoped, tag = 'output window, operand 0']
    %9 = vsyncpa [#allocation3], 0
    %s10 = scalar_lea.sflag [#allocation3], 1
    %11 = vsyncpa %s10, 0
    %12 = vsyncpa [#allocation4], 0
    %s13 = scalar_lea.sflag [#allocation4], 1
    %14 = vsyncpa %s13, 0
    loop: start=0, step=1, limit=4
    $region2: #{tpu_custom_call.1} parent=1 // loop_pre_header
      _
    $region3: #{tpu_custom_call.1} parent=1 // loop_header
      %s16 = sphi 0, %s20
      %p17 = scmp.ge.s32.totalorder %s16, 4
      %s26 = sphi 0, %s28
      %s29 = sphi 0, %s26
      %s30 = sphi 0, %s29
      %s46 = sphi 0, %s30
      %s50 = sphi 0, %s50
      %s52 = sphi 0, %s50
      %s53 = sphi 0, %s52
      %s67 = sphi 0, %s53
      %s71 = sphi 0, %s71
      %s73 = sphi 0, %s71
      %s74 = sphi 0, %s73
      %s88 = sphi 0, %s74
      %s92 = sphi 0, %s92
      %s94 = sphi 0, %s92
      %s95 = sphi 0, %s94
      %s109 = sphi 0, %s95
      %s115 = sphi 0, %s117
      %s118 = sphi 0, %s115
      %s119 = sphi 0, %s118
      %s135 = sphi 0, %s119
    $region4: #{tpu_custom_call.1} parent=1 // loop_header_branch
      %19 = sbr.rel (%p17) target = $region8
    $region5: #{tpu_custom_call.1} parent=1 // loop_body
      %s21 = ssub.s32 %s16, 1
      %s22 = ssub.s32 %s16, 2
      %s23 = sadd.s32 %s16, 1
      %s24 = ssub.s32 %s16, %s23
      %p25 = scmp.eq.s32.totalorder %s24, 0
      %s27 = sadd.s32 %s26, 1
      %s28 = scalar_select %p25, %s26, %s27
      %p31 = pneg %p25
      %p32 = scmp.eq.s32.totalorder %s16, 1
      %p33 = por %p31, %p32
      %p34 = scmp.ne.s32.totalorder %s26, %s29
      %p35 = scmp.eq.s32.totalorder %s16, 0
      %p36 = por %p34, %p35
      %p37 = scmp.ne.s32.totalorder %s26, %s29
      %p38 = scmp.eq.s32.totalorder %s21, 1
      %p39 = por %p37, %p38
      %p40 = scmp.ne.s32.totalorder %s29, %s30
      %p41 = scmp.eq.s32.totalorder %s21, 0
      %p42 = por %p40, %p41
      %p43 = scmp.ne.s32.totalorder %s29, %s30
      %p44 = scmp.eq.s32.totalorder %s22, 1
      %p45 = por %p43, %p44
      %p47 = scmp.ne.s32.totalorder %s30, %s46
      %p48 = scmp.eq.s32.totalorder %s22, 0
      %p49 = por %p47, %p48
      %s51 = sadd.s32 %s50, 1
      %p54 = scmp.eq.s32.totalorder %s16, 1
      %p55 = scmp.ne.s32.totalorder %s50, %s52
      %p56 = scmp.eq.s32.totalorder %s16, 0
      %p57 = por %p55, %p56
      %p58 = scmp.ne.s32.totalorder %s50, %s52
      %p59 = scmp.eq.s32.totalorder %s21, 1
      %p60 = por %p58, %p59
      %p61 = scmp.ne.s32.totalorder %s52, %s53
      %p62 = scmp.eq.s32.totalorder %s21, 0
      %p63 = por %p61, %p62
      %p64 = scmp.ne.s32.totalorder %s52, %s53
      %p65 = scmp.eq.s32.totalorder %s22, 1
      %p66 = por %p64, %p65
      %p68 = scmp.ne.s32.totalorder %s53, %s67
      %p69 = scmp.eq.s32.totalorder %s22, 0
      %p70 = por %p68, %p69
      %s72 = sadd.s32 %s71, 1
      %p75 = scmp.eq.s32.totalorder %s16, 1
      %p76 = scmp.ne.s32.totalorder %s71, %s73
      %p77 = scmp.eq.s32.totalorder %s16, 0
      %p78 = por %p76, %p77
      %p79 = scmp.ne.s32.totalorder %s71, %s73
      %p80 = scmp.eq.s32.totalorder %s21, 1
      %p81 = por %p79, %p80
      %p82 = scmp.ne.s32.totalorder %s73, %s74
      %p83 = scmp.eq.s32.totalorder %s21, 0
      %p84 = por %p82, %p83
      %p85 = scmp.ne.s32.totalorder %s73, %s74
      %p86 = scmp.eq.s32.totalorder %s22, 1
      %p87 = por %p85, %p86
      %p89 = scmp.ne.s32.totalorder %s74, %s88
      %p90 = scmp.eq.s32.totalorder %s22, 0
      %p91 = por %p89, %p90
      %s93 = sadd.s32 %s92, 1
      %p96 = scmp.eq.s32.totalorder %s16, 1
      %p97 = scmp.ne.s32.totalorder %s92, %s94
      %p98 = scmp.eq.s32.totalorder %s16, 0
      %p99 = por %p97, %p98
      %p100 = scmp.ne.s32.totalorder %s92, %s94
      %p101 = scmp.eq.s32.totalorder %s21, 1
      %p102 = por %p100, %p101
      %p103 = scmp.ne.s32.totalorder %s94, %s95
      %p104 = scmp.eq.s32.totalorder %s21, 0
      %p105 = por %p103, %p104
      %p106 = scmp.ne.s32.totalorder %s94, %s95
      %p107 = scmp.eq.s32.totalorder %s22, 1
      %p108 = por %p106, %p107
      %p110 = scmp.ne.s32.totalorder %s95, %s109
      %p111 = scmp.eq.s32.totalorder %s22, 0
      %p112 = por %p110, %p111
      %s113 = ssub.s32 %s16, %s23
      %p114 = scmp.eq.s32.totalorder %s113, 0
      %s116 = sadd.s32 %s115, 1
      %s117 = scalar_select %p114, %s115, %s116
      %p120 = pneg %p114
      %p121 = scmp.eq.s32.totalorder %s16, 1
      %p122 = por %p120, %p121
      %p123 = scmp.ne.s32.totalorder %s115, %s118
      %p124 = scmp.eq.s32.totalorder %s16, 0
      %p125 = por %p123, %p124
      %p126 = scmp.ne.s32.totalorder %s115, %s118
      %p127 = scmp.eq.s32.totalorder %s21, 1
      %p128 = por %p126, %p127
      %p129 = scmp.ne.s32.totalorder %s118, %s119
      %p130 = scmp.eq.s32.totalorder %s21, 0
      %p131 = por %p129, %p130
      %p132 = scmp.ne.s32.totalorder %s118, %s119
      %p133 = scmp.eq.s32.totalorder %s22, 1
      %p134 = por %p132, %p133
      %p136 = scmp.ne.s32.totalorder %s119, %s135
      %p137 = scmp.eq.s32.totalorder %s22, 0
      %p138 = por %p136, %p137
      %p139 = scmp.le.s32.totalorder 1, %s16
      %p140 = scmp.lt.s32.totalorder %s16, 3
      %p141 = pnand %p139, %p140
      %p142 = pneg %p141
      // Predicated region
      $region9: #{tpu_custom_call.1} parent=5 // pred_check
        _
      $region10: #{tpu_custom_call.1} parent=5 // pred_check_branch
        %144 = sbr.rel (%p141) target = $region12
      $region11: #{tpu_custom_call.1} parent=5 // pred_region
        %s145 = ssub.s32 %s16, 1
        // Predicated region
        $region13: #{tpu_custom_call.1} parent=11 // pred_check
          %p146 = pneg %p63
        $region14: #{tpu_custom_call.1} parent=11 // pred_check_branch
          %148 = sbr.rel (%p146) target = $region16
        $region15: #{tpu_custom_call.1} parent=11 // pred_region
          _
        $region16: #{tpu_custom_call.1} parent=11 // pred_fallthru
          _
        // Predicated region
        $region17: #{tpu_custom_call.1} parent=11 // pred_check
          %p149 = pneg %p84
        $region18: #{tpu_custom_call.1} parent=11 // pred_check_branch
          %151 = sbr.rel (%p149) target = $region20
        $region19: #{tpu_custom_call.1} parent=11 // pred_region
          _
        $region20: #{tpu_custom_call.1} parent=11 // pred_fallthru
          _
        // Predicated region
        $region21: #{tpu_custom_call.1} parent=11 // pred_check
          %p152 = pneg %p105
        $region22: #{tpu_custom_call.1} parent=11 // pred_check_branch
          %154 = sbr.rel (%p152) target = $region24
        $region23: #{tpu_custom_call.1} parent=11 // pred_region
          _
        $region24: #{tpu_custom_call.1} parent=11 // pred_fallthru
          _
      $region12: #{tpu_custom_call.1} parent=5 // pred_fallthru
        _
      %p155 = scmp.lt.s32.totalorder %s16, 2
      // Predicated region
      $region25: #{tpu_custom_call.1} parent=5 // pred_check
        %p156 = pneg %p155
      $region26: #{tpu_custom_call.1} parent=5 // pred_check_branch
        %158 = sbr.rel (%p156) target = $region28
      $region27: #{tpu_custom_call.1} parent=5 // pred_region
        // Predicated region
        $region29: #{tpu_custom_call.1} parent=27 // pred_check
          %p159 = pneg %p36
        $region30: #{tpu_custom_call.1} parent=27 // pred_check_branch
          %161 = sbr.rel (%p159) target = $region32
        $region31: #{tpu_custom_call.1} parent=27 // pred_region
          %s162 = sand.u32 %s26, 1
          %s163 = scalar_lea.sflag [#allocation3], %s162
          %s164 = sand.u32 %s26, 1
          %s165 = smul.addr %s164, 128
          %s166 = scalar_lea.vmem [#allocation2], %s165
          %s167 = smul.u32 16, %s16
          %s169 = ssub.s32 2048, 2048
          %170 = vsyncadd %s163, %s169
          %s171 = smul.addr %s167, 128
          %s172 = scalar_lea.hbm %s0, %s171
          %s173 = sshll.u32 %s166, 4
          %s174 = int_to_ptr.vmem [resolvable:$true] %s173
          %179 = dma.hbm_to_vmem [thread:$0]  %s172, 2048, %s174, %s163, 128, 128, 8
        $region32: #{tpu_custom_call.1} parent=27 // pred_fallthru
          _
      $region28: #{tpu_custom_call.1} parent=5 // pred_fallthru
        _
      %p180 = scmp.le.s32.totalorder 1, %s16
      %p181 = scmp.lt.s32.totalorder %s16, 3
      %p182 = pnand %p180, %p181
      %p183 = pneg %p182
      // Predicated region
      $region33: #{tpu_custom_call.1} parent=5 // pred_check
        _
      $region34: #{tpu_custom_call.1} parent=5 // pred_check_branch
        %185 = sbr.rel (%p182) target = $region36
      $region35: #{tpu_custom_call.1} parent=5 // pred_region
        %s186 = ssub.s32 %s16, 1
        %s187 = sand.u32 %s29, 1
        %s188 = scalar_lea.sflag [#allocation3], %s187
        %s189 = sand.u32 %s29, 1
        %s190 = smul.addr %s189, 128
        %s191 = scalar_lea.vmem [#allocation2], %s190
        // Predicated region
        $region37: #{tpu_custom_call.1} parent=35 // pred_check
          %p192 = pneg %p42
        $region38: #{tpu_custom_call.1} parent=35 // pred_check_branch
          %194 = sbr.rel (%p192) target = $region40
        $region39: #{tpu_custom_call.1} parent=35 // pred_region
          %195 = dma.done %s188, 2048
        $region40: #{tpu_custom_call.1} parent=35 // pred_fallthru
          _
        %s196 = sand.u32 %s29, 1
        %s197 = scalar_lea.sflag [#allocation3], %s196
        %s198 = sand.u32 %s29, 1
        %s199 = smul.addr %s198, 128
        %s200 = scalar_lea.vmem [#allocation2], %s199
        %p201 = pneg %p42
        %p202 = pneg %p39
        %p203 = pneg %p63
        %p204 = pneg %p60
        %p205 = pneg %p84
        %p206 = pneg %p81
        %p207 = pneg %p105
        %p208 = pneg %p102
        %p209 = pneg %p131
        %p210 = pneg %p128
        %s211 = sand.u32 %s118, 1
        %s212 = scalar_lea.sflag [#allocation4], %s211
        %s213 = sand.u32 %s118, 1
        %s214 = smul.addr %s213, 2
        %s215 = scalar_lea.vmem [#allocation5], %s214
        %s216 = smul.u32 16, %s21
        %v217 = vld [vmem:[%s191] sm:$0xff]
        %v218 = vld [vmem:[%s191 + $0x8] sm:$0xff]
        %v219 = vld [vmem:[%s191 + $0x10] sm:$0xff]
        %v220 = vld [vmem:[%s191 + $0x18] sm:$0xff]
        %v221 = vld [vmem:[%s191 + $0x20] sm:$0xff]
        %v222 = vld [vmem:[%s191 + $0x28] sm:$0xff]
        %v223 = vld [vmem:[%s191 + $0x30] sm:$0xff]
        %v224 = vld [vmem:[%s191 + $0x38] sm:$0xff]
        %v225 = vld [vmem:[%s191 + $0x40] sm:$0xff]
        %v226 = vld [vmem:[%s191 + $0x48] sm:$0xff]
        %v227 = vld [vmem:[%s191 + $0x50] sm:$0xff]
        %v228 = vld [vmem:[%s191 + $0x58] sm:$0xff]
        %v229 = vld [vmem:[%s191 + $0x60] sm:$0xff]
        %v230 = vld [vmem:[%s191 + $0x68] sm:$0xff]
        %v231 = vld [vmem:[%s191 + $0x70] sm:$0xff]
        %v232 = vld [vmem:[%s191 + $0x78] sm:$0xff]
        %v233 = vld [vmem:[%s1] sm:$0xff]
        %v234 = vld [vmem:[%s1 + $0x8] sm:$0xff]
        %v235 = vld [vmem:[%s1 + $0x10] sm:$0xff]
        %v236 = vld [vmem:[%s1 + $0x18] sm:$0xff]
        %v237 = vld [vmem:[%s1 + $0x20] sm:$0xff]
        %v238 = vld [vmem:[%s1 + $0x28] sm:$0xff]
        %v239 = vld [vmem:[%s1 + $0x30] sm:$0xff]
        %v240 = vld [vmem:[%s1 + $0x38] sm:$0xff]
        %v241 = vld [vmem:[%s1 + $0x40] sm:$0xff]
        %v242 = vld [vmem:[%s1 + $0x48] sm:$0xff]
        %v243 = vld [vmem:[%s1 + $0x50] sm:$0xff]
        %v244 = vld [vmem:[%s1 + $0x58] sm:$0xff]
        %v245 = vld [vmem:[%s1 + $0x60] sm:$0xff]
        %v246 = vld [vmem:[%s1 + $0x68] sm:$0xff]
        %v247 = vld [vmem:[%s1 + $0x70] sm:$0xff]
        %v248 = vld [vmem:[%s1 + $0x78] sm:$0xff]
        %v249 = vld [vmem:[%s2] sm:$0x1]
        %v251 = vlaneseq
        %v252 = vshrl.u32 %v251, 7
        %v253 = vsub.s32 0, %v252
        %v254 = vrot.slane %v249, %v253
        %256 = vmatprep.subr.mxu0 0.0
        %257 = vmatpush1.msra.mxu0 %v233
        %258 = vmatprep.subr.mxu0 0.0
        %259 = vmatpush1.msra.mxu0 %v234
        %260 = vmatprep.subr.mxu0 0.0
        %261 = vmatpush1.msra.mxu0 %v235
        %262 = vmatprep.subr.mxu0 0.0
        %263 = vmatpush1.msra.mxu0 %v236
        %264 = vmatprep.subr.mxu0 0.0
        %265 = vmatpush1.msra.mxu0 %v237
        %266 = vmatprep.subr.mxu0 0.0
        %267 = vmatpush1.msra.mxu0 %v238
        %268 = vmatprep.subr.mxu0 0.0
        %269 = vmatpush1.msra.mxu0 %v239
        %270 = vmatprep.subr.mxu0 0.0
        %271 = vmatpush1.msra.mxu0 %v240
        %272 = vmatprep.subr.mxu0 0.0
        %273 = vmatpush1.msra.mxu0 %v241
        %274 = vmatprep.subr.mxu0 0.0
        %275 = vmatpush1.msra.mxu0 %v242
        %276 = vmatprep.subr.mxu0 0.0
        %277 = vmatpush1.msra.mxu0 %v243
        %278 = vmatprep.subr.mxu0 0.0
        %279 = vmatpush1.msra.mxu0 %v244
        %280 = vmatprep.subr.mxu0 0.0
        %281 = vmatpush1.msra.mxu0 %v245
        %282 = vmatprep.subr.mxu0 0.0
        %283 = vmatpush1.msra.mxu0 %v246
        %284 = vmatprep.subr.mxu0 0.0
        %285 = vmatpush1.msra.mxu0 %v247
        %286 = vmatprep.subr.mxu0 0.0
        %287 = vmatpush1.msra.mxu0 %v248
        %288 = vmatprep.subr.mxu0 0.0
        %289 = vmatpush1.msra.mxu0 0.0
        %290 = vmatprep.subr.mxu0 0.0
        %291 = vmatpush1.msra.mxu0 0.0
        %292 = vmatprep.subr.mxu0 0.0
        %293 = vmatpush1.msra.mxu0 0.0
        %294 = vmatprep.subr.mxu0 0.0
        %295 = vmatpush1.msra.mxu0 0.0
        %296 = vmatprep.subr.mxu0 0.0
        %297 = vmatpush1.msra.mxu0 0.0
        %298 = vmatprep.subr.mxu0 0.0
        %299 = vmatpush1.msra.mxu0 0.0
        %300 = vmatprep.subr.mxu0 0.0
        %301 = vmatpush1.msra.mxu0 0.0
        %302 = vmatprep.subr.mxu0 0.0
        %303 = vmatpush1.msra.mxu0 0.0
        %304 = vmatprep.subr.mxu0 0.0
        %305 = vmatpush1.msra.mxu0 0.0
        %306 = vmatprep.subr.mxu0 0.0
        %307 = vmatpush1.msra.mxu0 0.0
        %308 = vmatprep.subr.mxu0 0.0
        %309 = vmatpush1.msra.mxu0 0.0
        %310 = vmatprep.subr.mxu0 0.0
        %311 = vmatpush1.msra.mxu0 0.0
        %312 = vmatprep.subr.mxu0 0.0
        %313 = vmatpush1.msra.mxu0 0.0
        %314 = vmatprep.subr.mxu0 0.0
        %315 = vmatpush1.msra.mxu0 0.0
        %316 = vmatprep.subr.mxu0 0.0
        %317 = vmatpush1.msra.mxu0 0.0
        %318 = vmatprep.subr.mxu0 0.0
        %319 = vmatpush1.msra.mxu0 0.0
        %320 = vmatprep.mubr.f32.mxu0 0.0
        %321 = vmatmul.mubr.f32.gmra.mrb[0].mxu0 %v217
        %v322 = vpop.f32.mrb[0].mxu0
        %v323 = vadd.f32 %v254, %v322
        %v324 = vpop.f32.mrb[0].mxu0
        %325 = vmatprep.mubr.f32.mxu0 0.0
        %326 = vmatmul.mubr.f32.gmra.mrb[0].mxu0 %v218
        %v327 = vpop.f32.mrb[0].mxu0
        %v328 = vadd.f32 %v254, %v327
        %v329 = vpop.f32.mrb[0].mxu0
        %330 = vmatprep.mubr.f32.mxu0 0.0
        %331 = vmatmul.mubr.f32.gmra.mrb[0].mxu0 %v219
        %v332 = vpop.f32.mrb[0].mxu0
        %v333 = vadd.f32 %v254, %v332
        %v334 = vpop.f32.mrb[0].mxu0
        %335 = vmatprep.mubr.f32.mxu0 0.0
        %336 = vmatmul.mubr.f32.gmra.mrb[0].mxu0 %v220
        %v337 = vpop.f32.mrb[0].mxu0
        %v338 = vadd.f32 %v254, %v337
        %v339 = vpop.f32.mrb[0].mxu0
        %340 = vmatprep.mubr.f32.mxu0 0.0
        %341 = vmatmul.mubr.f32.gmra.mrb[0].mxu0 %v221
        %v342 = vpop.f32.mrb[0].mxu0
        %v343 = vadd.f32 %v254, %v342
        %v344 = vpop.f32.mrb[0].mxu0
        %345 = vmatprep.mubr.f32.mxu0 0.0
        %346 = vmatmul.mubr.f32.gmra.mrb[0].mxu0 %v222
        %v347 = vpop.f32.mrb[0].mxu0
        %v348 = vadd.f32 %v254, %v347
        %v349 = vpop.f32.mrb[0].mxu0
        %350 = vmatprep.mubr.f32.mxu0 0.0
        %351 = vmatmul.mubr.f32.gmra.mrb[0].mxu0 %v223
        %v352 = vpop.f32.mrb[0].mxu0
        %v353 = vadd.f32 %v254, %v352
        %v354 = vpop.f32.mrb[0].mxu0
        %355 = vmatprep.mubr.f32.mxu0 0.0
        %356 = vmatmul.mubr.f32.gmra.mrb[0].mxu0 %v224
        %v357 = vpop.f32.mrb[0].mxu0
        %v358 = vadd.f32 %v254, %v357
        %v359 = vpop.f32.mrb[0].mxu0
        %360 = vmatprep.mubr.f32.mxu0 0.0
        %361 = vmatmul.mubr.f32.gmra.mrb[0].mxu0 %v225
        %v362 = vpop.f32.mrb[0].mxu0
        %v363 = vadd.f32 %v254, %v362
        %v364 = vpop.f32.mrb[0].mxu0
        %365 = vmatprep.mubr.f32.mxu0 0.0
        %366 = vmatmul.mubr.f32.gmra.mrb[0].mxu0 %v226
        %v367 = vpop.f32.mrb[0].mxu0
        %v368 = vadd.f32 %v254, %v367
        %v369 = vpop.f32.mrb[0].mxu0
        %370 = vmatprep.mubr.f32.mxu0 0.0
        %371 = vmatmul.mubr.f32.gmra.mrb[0].mxu0 %v227
        %v372 = vpop.f32.mrb[0].mxu0
        %v373 = vadd.f32 %v254, %v372
        %v374 = vpop.f32.mrb[0].mxu0
        %375 = vmatprep.mubr.f32.mxu0 0.0
        %376 = vmatmul.mubr.f32.gmra.mrb[0].mxu0 %v228
        %v377 = vpop.f32.mrb[0].mxu0
        %v378 = vadd.f32 %v254, %v377
        %v379 = vpop.f32.mrb[0].mxu0
        %380 = vmatprep.mubr.f32.mxu0 0.0
        %381 = vmatmul.mubr.f32.gmra.mrb[0].mxu0 %v229
        %v382 = vpop.f32.mrb[0].mxu0
        %v383 = vadd.f32 %v254, %v382
        %v384 = vpop.f32.mrb[0].mxu0
        %385 = vmatprep.mubr.f32.mxu0 0.0
        %386 = vmatmul.mubr.f32.gmra.mrb[0].mxu0 %v230
        %v387 = vpop.f32.mrb[0].mxu0
        %v388 = vadd.f32 %v254, %v387
        %v389 = vpop.f32.mrb[0].mxu0
        %390 = vmatprep.mubr.f32.mxu0 0.0
        %391 = vmatmul.mubr.f32.gmra.mrb[0].mxu0 %v231
        %v392 = vpop.f32.mrb[0].mxu0
        %v393 = vadd.f32 %v254, %v392
        %v394 = vpop.f32.mrb[0].mxu0
        %395 = vmatprep.mubr.f32.mxu0 0.0
        %396 = vmatmul.mubr.f32.gmra.mrb[0].mxu0 %v232
        %v397 = vpop.f32.mrb[0].mxu0
        %v398 = vadd.f32 %v254, %v397
        %v399 = vpop.f32.mrb[0].mxu0
        %400 = vdwg.mxu0
        %v401 = vtanh.pop %v323
        %v402 = vtanh.pop %v328
        %v403 = vtanh.pop %v333
        %v404 = vtanh.pop %v338
        %v405 = vtanh.pop %v343
        %v406 = vtanh.pop %v348
        %v407 = vtanh.pop %v353
        %v408 = vtanh.pop %v358
        %v409 = vtanh.pop %v363
        %v410 = vtanh.pop %v368
        %v411 = vtanh.pop %v373
        %v412 = vtanh.pop %v378
        %v413 = vtanh.pop %v383
        %v414 = vtanh.pop %v388
        %v415 = vtanh.pop %v393
        %v416 = vtanh.pop %v398
        %v417 = vld [vmem:[%s3] sm:$0x1]
        %vm418 = vcmask 261120
        %v420 = vsel %vm418, %v417, 0
        %v423 = vsel %vm418, %v401, 0
        %v426 = vsel %vm418, %v402, 0
        %v429 = vsel %vm418, %v403, 0
        %v432 = vsel %vm418, %v404, 0
        %v435 = vsel %vm418, %v405, 0
        %v438 = vsel %vm418, %v406, 0
        %v441 = vsel %vm418, %v407, 0
        %v444 = vsel %vm418, %v408, 0
        %v447 = vsel %vm418, %v409, 0
        %v450 = vsel %vm418, %v410, 0
        %v453 = vsel %vm418, %v411, 0
        %v456 = vsel %vm418, %v412, 0
        %v459 = vsel %vm418, %v413, 0
        %v462 = vsel %vm418, %v414, 0
        %v465 = vsel %vm418, %v415, 0
        %v468 = vsel %vm418, %v416, 0
        %470 = vmatprep.subr.mxu0 0.0
        %471 = vmatpush1.xpose.msra.mxu0 %v423
        %472 = vmatprep.subr.mxu0 0.0
        %473 = vmatpush1.xpose.msra.mxu0 %v426
        %474 = vmatprep.subr.mxu0 0.0
        %475 = vmatpush1.xpose.msra.mxu0 %v429
        %476 = vmatprep.subr.mxu0 0.0
        %477 = vmatpush1.xpose.msra.mxu0 %v432
        %478 = vmatprep.subr.mxu0 0.0
        %479 = vmatpush1.xpose.msra.mxu0 %v435
        %480 = vmatprep.subr.mxu0 0.0
        %481 = vmatpush1.xpose.msra.mxu0 %v438
        %482 = vmatprep.subr.mxu0 0.0
        %483 = vmatpush1.xpose.msra.mxu0 %v441
        %484 = vmatprep.subr.mxu0 0.0
        %485 = vmatpush1.xpose.msra.mxu0 %v444
        %486 = vmatprep.subr.mxu0 0.0
        %487 = vmatpush1.xpose.msra.mxu0 %v447
        %488 = vmatprep.subr.mxu0 0.0
        %489 = vmatpush1.xpose.msra.mxu0 %v450
        %490 = vmatprep.subr.mxu0 0.0
        %491 = vmatpush1.xpose.msra.mxu0 %v453
        %492 = vmatprep.subr.mxu0 0.0
        %493 = vmatpush1.xpose.msra.mxu0 %v456
        %494 = vmatprep.subr.mxu0 0.0
        %495 = vmatpush1.xpose.msra.mxu0 %v459
        %496 = vmatprep.subr.mxu0 0.0
        %497 = vmatpush1.xpose.msra.mxu0 %v462
        %498 = vmatprep.subr.mxu0 0.0
        %499 = vmatpush1.xpose.msra.mxu0 %v465
        %500 = vmatprep.subr.mxu0 0.0
        %501 = vmatpush1.xpose.msra.mxu0 %v468
        %502 = vmatprep.subr.mxu0 0.0
        %503 = vmatpush1.xpose.msra.mxu0 0.0
        %504 = vmatprep.subr.mxu0 0.0
        %505 = vmatpush1.xpose.msra.mxu0 0.0
        %506 = vmatprep.subr.mxu0 0.0
        %507 = vmatpush1.xpose.msra.mxu0 0.0
        %508 = vmatprep.subr.mxu0 0.0
        %509 = vmatpush1.xpose.msra.mxu0 0.0
        %510 = vmatprep.subr.mxu0 0.0
        %511 = vmatpush1.xpose.msra.mxu0 0.0
        %512 = vmatprep.subr.mxu0 0.0
        %513 = vmatpush1.xpose.msra.mxu0 0.0
        %514 = vmatprep.subr.mxu0 0.0
        %515 = vmatpush1.xpose.msra.mxu0 0.0
        %516 = vmatprep.subr.mxu0 0.0
        %517 = vmatpush1.xpose.msra.mxu0 0.0
        %518 = vmatprep.subr.mxu0 0.0
        %519 = vmatpush1.xpose.msra.mxu0 0.0
        %520 = vmatprep.subr.mxu0 0.0
        %521 = vmatpush1.xpose.msra.mxu0 0.0
        %522 = vmatprep.subr.mxu0 0.0
        %523 = vmatpush1.xpose.msra.mxu0 0.0
        %524 = vmatprep.subr.mxu0 0.0
        %525 = vmatpush1.xpose.msra.mxu0 0.0
        %526 = vmatprep.subr.mxu0 0.0
        %527 = vmatpush1.xpose.msra.mxu0 0.0
        %528 = vmatprep.subr.mxu0 0.0
        %529 = vmatpush1.xpose.msra.mxu0 0.0
        %530 = vmatprep.subr.mxu0 0.0
        %531 = vmatpush1.xpose.msra.mxu0 0.0
        %532 = vmatprep.subr.mxu0 0.0
        %533 = vmatpush1.xpose.msra.mxu0 0.0
        %534 = vmatprep.mubr.f32.mxu0 0.0
        %535 = vmatmul.mubr.f32.gmra.mrb[0].mxu0 %v420
        %v536 = vpop.f32.mrb[0].mxu0
        %v537 = vadd.f32 0.0, %v536
        %v538 = vpop.f32.mrb[0].mxu0
        %539 = vdwg.mxu0
        %vm540 = vcmp.ne.f32.partialorder %v217, 0.0
        %vm541 = vcmp.ne.f32.partialorder %v218, 0.0
        %vm542 = vcmp.ne.f32.partialorder %v219, 0.0
        %vm543 = vcmp.ne.f32.partialorder %v220, 0.0
        %vm544 = vcmp.ne.f32.partialorder %v221, 0.0
        %vm545 = vcmp.ne.f32.partialorder %v222, 0.0
        %vm546 = vcmp.ne.f32.partialorder %v223, 0.0
        %vm547 = vcmp.ne.f32.partialorder %v224, 0.0
        %vm548 = vcmp.ne.f32.partialorder %v225, 0.0
        %vm549 = vcmp.ne.f32.partialorder %v226, 0.0
        %vm550 = vcmp.ne.f32.partialorder %v227, 0.0
        %vm551 = vcmp.ne.f32.partialorder %v228, 0.0
        %vm552 = vcmp.ne.f32.partialorder %v229, 0.0
        %vm553 = vcmp.ne.f32.partialorder %v230, 0.0
        %vm554 = vcmp.ne.f32.partialorder %v231, 0.0
        %vm555 = vcmp.ne.f32.partialorder %v232, 0.0
        %v556 = vsel %vm540, 1, 0
        %v557 = vsel %vm541, 1, 0
        %v558 = vsel %vm542, 1, 0
        %v559 = vsel %vm543, 1, 0
        %v560 = vsel %vm544, 1, 0
        %v561 = vsel %vm545, 1, 0
        %v562 = vsel %vm546, 1, 0
        %v563 = vsel %vm547, 1, 0
        %v564 = vsel %vm548, 1, 0
        %v565 = vsel %vm549, 1, 0
        %v566 = vsel %vm550, 1, 0
        %v567 = vsel %vm551, 1, 0
        %v568 = vsel %vm552, 1, 0
        %v569 = vsel %vm553, 1, 0
        %v570 = vsel %vm554, 1, 0
        %v571 = vsel %vm555, 1, 0
        %v572 = vcvt.s32.f32 %v556
        %v573 = vcvt.s32.f32 %v557
        %v574 = vcvt.s32.f32 %v558
        %v575 = vcvt.s32.f32 %v559
        %v576 = vcvt.s32.f32 %v560
        %v577 = vcvt.s32.f32 %v561
        %v578 = vcvt.s32.f32 %v562
        %v579 = vcvt.s32.f32 %v563
        %v580 = vcvt.s32.f32 %v564
        %v581 = vcvt.s32.f32 %v565
        %v582 = vcvt.s32.f32 %v566
        %v583 = vcvt.s32.f32 %v567
        %v584 = vcvt.s32.f32 %v568
        %v585 = vcvt.s32.f32 %v569
        %v586 = vcvt.s32.f32 %v570
        %v587 = vcvt.s32.f32 %v571
        %588 = vmatprep.subr.mxu0 0.0
        %589 = vmatpush1.xpose.msra.mxu0 %v572
        %590 = vmatprep.subr.mxu0 0.0
        %591 = vmatpush1.xpose.msra.mxu0 %v573
        %592 = vmatprep.subr.mxu0 0.0
        %593 = vmatpush1.xpose.msra.mxu0 %v574
        %594 = vmatprep.subr.mxu0 0.0
        %595 = vmatpush1.xpose.msra.mxu0 %v575
        %596 = vmatprep.subr.mxu0 0.0
        %597 = vmatpush1.xpose.msra.mxu0 %v576
        %598 = vmatprep.subr.mxu0 0.0
        %599 = vmatpush1.xpose.msra.mxu0 %v577
        %600 = vmatprep.subr.mxu0 0.0
        %601 = vmatpush1.xpose.msra.mxu0 %v578
        %602 = vmatprep.subr.mxu0 0.0
        %603 = vmatpush1.xpose.msra.mxu0 %v579
        %604 = vmatprep.subr.mxu0 0.0
        %605 = vmatpush1.xpose.msra.mxu0 %v580
        %606 = vmatprep.subr.mxu0 0.0
        %607 = vmatpush1.xpose.msra.mxu0 %v581
        %608 = vmatprep.subr.mxu0 0.0
        %609 = vmatpush1.xpose.msra.mxu0 %v582
        %610 = vmatprep.subr.mxu0 0.0
        %611 = vmatpush1.xpose.msra.mxu0 %v583
        %612 = vmatprep.subr.mxu0 0.0
        %613 = vmatpush1.xpose.msra.mxu0 %v584
        %614 = vmatprep.subr.mxu0 0.0
        %615 = vmatpush1.xpose.msra.mxu0 %v585
        %616 = vmatprep.subr.mxu0 0.0
        %617 = vmatpush1.xpose.msra.mxu0 %v586
        %618 = vmatprep.subr.mxu0 0.0
        %619 = vmatpush1.xpose.msra.mxu0 %v587
        %620 = vmatprep.subr.mxu0 0.0
        %621 = vmatpush1.xpose.msra.mxu0 0.0
        %622 = vmatprep.subr.mxu0 0.0
        %623 = vmatpush1.xpose.msra.mxu0 0.0
        %624 = vmatprep.subr.mxu0 0.0
        %625 = vmatpush1.xpose.msra.mxu0 0.0
        %626 = vmatprep.subr.mxu0 0.0
        %627 = vmatpush1.xpose.msra.mxu0 0.0
        %628 = vmatprep.subr.mxu0 0.0
        %629 = vmatpush1.xpose.msra.mxu0 0.0
        %630 = vmatprep.subr.mxu0 0.0
        %631 = vmatpush1.xpose.msra.mxu0 0.0
        %632 = vmatprep.subr.mxu0 0.0
        %633 = vmatpush1.xpose.msra.mxu0 0.0
        %634 = vmatprep.subr.mxu0 0.0
        %635 = vmatpush1.xpose.msra.mxu0 0.0
        %636 = vmatprep.subr.mxu0 0.0
        %637 = vmatpush1.xpose.msra.mxu0 0.0
        %638 = vmatprep.subr.mxu0 0.0
        %639 = vmatpush1.xpose.msra.mxu0 0.0
        %640 = vmatprep.subr.mxu0 0.0
        %641 = vmatpush1.xpose.msra.mxu0 0.0
        %642 = vmatprep.subr.mxu0 0.0
        %643 = vmatpush1.xpose.msra.mxu0 0.0
        %644 = vmatprep.subr.mxu0 0.0
        %645 = vmatpush1.xpose.msra.mxu0 0.0
        %646 = vmatprep.subr.mxu0 0.0
        %647 = vmatpush1.xpose.msra.mxu0 0.0
        %648 = vmatprep.subr.mxu0 0.0
        %649 = vmatpush1.xpose.msra.mxu0 0.0
        %650 = vmatprep.subr.mxu0 0.0
        %651 = vmatpush1.xpose.msra.mxu0 0.0
        %652 = vmatprep.mubr.f32.mxu0 0.0
        %653 = vmatmul.mubr.f32.gmra.mrb[0].mxu0 1.0
        %v654 = vpop.f32.mrb[0].mxu0
        %v655 = vadd.f32 0.0, %v654
        %v656 = vpop.f32.mrb[0].mxu0
        %657 = vdwg.mxu0
        %vm658 = vcmp.gt.f32.partialorder %v655, 0.0
        %v659 = vsel %vm658, 1, 0
        %v660 = vcvt.s32.f32 %v659
        %v661 = vmul.f32 %v537, %v660
        %v663 = vrot.slane %v660, 7
        %vm665 = vcmask 1040384
        %v666 = vsel %vm665, %v661, %v663
        %667 = vst [vmem:[%s215] sm:$0x3] %v666
        %s668 = sand.u32 %s118, 1
        %s669 = scalar_lea.sflag [#allocation4], %s668
        %s670 = sand.u32 %s118, 1
        %s671 = smul.addr %s670, 2
        %s672 = scalar_lea.vmem [#allocation5], %s671
        // Predicated region
        $region41: #{tpu_custom_call.1} parent=35 // pred_check
          %p673 = pneg %p128
        $region42: #{tpu_custom_call.1} parent=35 // pred_check_branch
          %675 = sbr.rel (%p673) target = $region44
        $region43: #{tpu_custom_call.1} parent=35 // pred_region
          %s677 = ssub.s32 32, 32
          %678 = vsyncadd %s669, %s677
          %s679 = smul.addr %s21, 32
          %s680 = scalar_lea.hbm %s4, %s679
          %s682 = sshll.u32 %s672, 4
          %s683 = int_to_ptr.vmem [resolvable:$true] %s682
          %685 = dma.vmem_to_hbm [thread:$0]  %s683, 32, %s680, %s669
        $region44: #{tpu_custom_call.1} parent=35 // pred_fallthru
          _
      $region36: #{tpu_custom_call.1} parent=5 // pred_fallthru
        _
      %p686 = scmp.le.s32.totalorder 2, %s16
      // Predicated region
      $region45: #{tpu_custom_call.1} parent=5 // pred_check
        %p687 = pneg %p686
      $region46: #{tpu_custom_call.1} parent=5 // pred_check_branch
        %689 = sbr.rel (%p687) target = $region48
      $region47: #{tpu_custom_call.1} parent=5 // pred_region
        %s690 = ssub.s32 %s16, 2
        // Predicated region
        $region49: #{tpu_custom_call.1} parent=47 // pred_check
          %p691 = pneg %p134
        $region50: #{tpu_custom_call.1} parent=47 // pred_check_branch
          %693 = sbr.rel (%p691) target = $region52
        $region51: #{tpu_custom_call.1} parent=47 // pred_region
          %s694 = sand.u32 %s119, 1
          %s695 = scalar_lea.sflag [#allocation4], %s694
          %s696 = sand.u32 %s119, 1
          %s697 = smul.addr %s696, 2
          %s698 = scalar_lea.vmem [#allocation5], %s697
          %699 = dma.done %s695, 32
        $region52: #{tpu_custom_call.1} parent=47 // pred_fallthru
          _
      $region48: #{tpu_custom_call.1} parent=5 // pred_fallthru
        _
    $region6: #{tpu_custom_call.1} parent=1 // loop_footer
      %s20 = sadd.s32 1, %s16
    $region7: #{tpu_custom_call.1} parent=1 // loop_footer_branch
      %15 = sbr.rel target = $region3
    $region8: #{tpu_custom_call.1} parent=1 // loop_exit
      _
    %700 = vsyncpa [#allocation3], 1
    %s701 = scalar_lea.sflag [#allocation3], 1
    %702 = vsyncpa %s701, 1
    %703 = vsyncpa [#allocation4], 1
    %s704 = scalar_lea.sflag [#allocation4], 1
    %705 = vsyncpa %s704, 1

</llo_original>
